<compile_context>
chip_gen: v7x
topology: tpu7x:2x2x1
jax: 0.10.0
libtpu: 0.0.40
codegen_flags: <defaults>
</compile_context>

<pallas_src>
import jax
import jax.numpy as jnp
from jax import lax
from jax.experimental import pallas as pl
from jax.experimental.pallas import tpu as pltpu


def _l2_norm_kernel(x_ref, o_ref):
    # x_ref / o_ref: (tb, D) tile in VMEM.  Reduce in f32 for numerics (XLU),
    # rsqrt on the EUP, final scale in the input dtype so bf16/int8 inputs never
    # materialize a full f32 tile on the store path (v6e/v7x bf16-native VPU).
    x = x_ref[...]
    xf = x.astype(jnp.float32)
    ss = jnp.sum(xf * xf, axis=1, keepdims=True)        # (tb, 1) sum over features
    inv = lax.rsqrt(ss + 1e-10)                         # 1/sqrt(sum(x^2)+1e-10)
    if o_ref.dtype == jnp.float32:
        o_ref[...] = xf * inv
    else:
        o_ref[...] = (x * inv.astype(x.dtype)).astype(o_ref.dtype)


def _sublane_multiple(dtype) -> int:
    itemsize = jnp.dtype(dtype).itemsize
    if itemsize >= 4:
        return 8       # f32
    if itemsize == 2:
        return 16      # bf16 (packed sublanes)
    return 32          # int8 / fp8


def _pick_tb(B: int, D: int, dtype) -> int:
    """Batch tile: ~6 MiB per direction (24 MiB live with double buffering),
    rounded to the sublane multiple, and small enough that the grid has at
    least 2 steps when B allows it (v7x megacore)."""
    itemsize = jnp.dtype(dtype).itemsize
    mult = _sublane_multiple(dtype)
    per_dir_budget = 6 * 1024 * 1024
    tb = per_dir_budget // (D * itemsize)
    tb = max(mult, (tb // mult) * mult)
    if B > mult:
        half = -(-B // 2)                                # ceil(B / 2)
        half = ((half + mult - 1) // mult) * mult
        tb = min(tb, half)
    return tb


def l2_norm(x, *, tb=None):
    """Row-wise L2 normalize a (B, D) array: x / sqrt(sum(x**2, axis=1) + 1e-10)."""
    B, D = x.shape
    mult = _sublane_multiple(x.dtype)
    if tb is None:
        tb = _pick_tb(B, D, x.dtype)
    else:
        tb = max(mult, (tb // mult) * mult)

    # No host-side padding: Pallas masks the OOB part of the partial last block
    # on store, and rows are independent, so garbage in the discarded rows is
    # harmless.  (Lane-dense note: block last dim == full D, so the (8,128)
    # constraint is always met; if D % 128 != 0 the stores are masked, which is
    # still cheaper than an extra pad/slice HBM round trip for this op.)
    n_blocks = pl.cdiv(B, tb)

    itemsize = jnp.dtype(x.dtype).itemsize
    buf_bytes = 4 * tb * D * itemsize                    # 2x in + 2x out double buffers
    vmem_limit = max(32 * 1024 * 1024, buf_bytes + 8 * 1024 * 1024)
    if buf_bytes + 8 * 1024 * 1024 <= 48 * 1024 * 1024:
        vmem_limit = min(vmem_limit, 48 * 1024 * 1024)   # headroom under v7x's 64 MiB
    # TODO(synk): for extremely large D (single-row tile > ~40 MiB) split D over
    # an extra "arbitrary" grid axis with an f32 partial-sum scratch accumulator.

    return pl.pallas_call(
        _l2_norm_kernel,
        out_shape=jax.ShapeDtypeStruct((B, D), x.dtype),
        grid_spec=pltpu.PrefetchScalarGridSpec(
            num_scalar_prefetch=0,
            grid=(n_blocks,),
            in_specs=[pl.BlockSpec((tb, D), lambda i: (i, 0))],
            out_specs=pl.BlockSpec((tb, D), lambda i: (i, 0)),
        ),
        compiler_params=pltpu.CompilerParams(
            dimension_semantics=("parallel",),
            vmem_limit_bytes=vmem_limit,
        ),
    )(x)


if __name__ == "__main__":
    key = jax.random.PRNGKey(0)
    B, D = 20, 128  # B is intentionally not a multiple of the tile -> partial last block
    x = jax.random.normal(key, (B, D), dtype=jnp.float32)

    # Auto-sized tile (B=20 -> tb=16 -> 2 grid steps, second one partial).
    out = jax.block_until_ready(l2_norm(x))

    # Reference mirrors the PyTorch forward exactly.
    norm = jnp.sqrt(jnp.sum(x.astype(jnp.float32) ** 2, axis=1) + 1e-10)
    ref = x / norm[:, None]
    assert out.shape == x.shape and out.dtype == x.dtype
    assert jnp.allclose(out, ref, atol=1e-5, rtol=1e-5), "mismatch vs reference (auto tile)"

    # Explicit small tile: multi-step grid + partial tail block.
    out_small = jax.block_until_ready(l2_norm(x, tb=8))
    assert jnp.allclose(out_small, ref, atol=1e-5, rtol=1e-5), "mismatch vs reference (tb=8)"

    print("KERNEL_OK")
</pallas_src>

<mosaic_0001>
module attributes {stable_mosaic.version = 11 : i64} {
  func.func @_l2_norm_kernel(%arg0: i32, %arg1: memref<16x128xf32, #tpu.memory_space<vmem>>, %arg2: memref<16x128xf32, #tpu.memory_space<vmem>>) attributes {dimension_semantics = [#tpu.dimension_semantics<parallel>], iteration_bounds = array<i64: 2>, scalar_prefetch = 0 : i64, scratch_operands = 0 : i64, tpu.core_type = #tpu.core_type<tc>, window_params = [{transform_indices = @transform_0, window_bounds = array<i64: 16, 128>}, {transform_indices = @transform_1, window_bounds = array<i64: 16, 128>}]} {
    %c0 = arith.constant 0 : index
    %c0_0 = arith.constant 0 : index
    %0 = vector.load %arg1[%c0, %c0_0] : memref<16x128xf32, #tpu.memory_space<vmem>>, vector<16x128xf32>
    %1 = arith.mulf %0, %0 : vector<16x128xf32>
    %cst = arith.constant dense<0.000000e+00> : vector<16xf32>
    %2 = vector.multi_reduction <add>, %1, %cst [1] : vector<16x128xf32> to vector<16xf32>
    %3 = vector.shape_cast %2 : vector<16xf32> to vector<16x1xf32>
    %cst_1 = arith.constant 1.000000e-10 : f32
    %4 = vector.broadcast %cst_1 : f32 to vector<16x1xf32>
    %5 = arith.addf %3, %4 : vector<16x1xf32>
    %6 = math.rsqrt %5 : vector<16x1xf32>
    %7 = vector.broadcast %6 : vector<16x1xf32> to vector<16x128xf32>
    %8 = arith.mulf %0, %7 : vector<16x128xf32>
    %c0_2 = arith.constant 0 : index
    %c0_3 = arith.constant 0 : index
    %9 = vector.load %arg2[%c0_2, %c0_3] : memref<16x128xf32, #tpu.memory_space<vmem>>, vector<16x128xf32>
    tpu.vector_store %arg2[%c0_2, %c0_3], %8 {strides = array<i32>} : memref<16x128xf32, #tpu.memory_space<vmem>>, vector<16x128xf32>,
    return
  }
  func.func @transform_0(%arg0: i32) -> (i32, i32) {
    %c0_i32 = arith.constant 0 : i32
    %c0_i32_0 = arith.constant 0 : i32
    return %arg0, %c0_i32 : i32, i32
  }
  func.func @transform_1(%arg0: i32) -> (i32, i32) {
    %c0_i32 = arith.constant 0 : i32
    %c0_i32_0 = arith.constant 0 : i32
    return %arg0, %c0_i32 : i32, i32
  }
}

</mosaic_0001>

<llo_original>
// kernel: tpu_custom_call.1
$region0: #{tpu_custom_call.1}
  #allocation0 [shape = 'u32[]', space=smem, size = 0x4, offset = 0x4, fixed_abs, tag = 'smem constant byte address 0x4 - core index']
  #allocation1 [shape = 'u32[144,128]{1,0:T(1,128)}', space=vmem, size = 0x12000, scoped, tag = 'internal scratch']
  %s0 = inlined_call_operand.hbm [shape: f32[20,128], index: 0, kind: input, shape index: {}]
  %s1 = inlined_call_operand.hbm [shape: f32[20,128], index: 1, kind: output, shape index: {}]
  %s2 = sld [smem:[#allocation0]]
  $region41: #{tpu_custom_call.1} parent=0
    _
  %s4 = ssub.s32 1, %s2
  %s5 = scalar_select 0, %s4, %s2
  $region1: #{tpu_custom_call.1} parent=0
    #allocation2 [shape = 'u8[16384]{0}', space=vmem, size = 0x4000, scoped, tag = 'input window, operand 0']
    #allocation3 [shape = 's32[2]{0}', space=sflag, size = 0x8, scoped, tag = 'scoped memory for tpu_custom_call.1']
    #allocation4 [shape = 's32[2]{0}', space=sflag, size = 0x8, scoped, tag = 'scoped memory for tpu_custom_call.1']
    #allocation5 [shape = 'u8[16384]{0}', space=vmem, size = 0x4000, scoped, tag = 'output window, operand 0']
    %6 = vsyncpa [#allocation3], 0
    %s7 = scalar_lea.sflag [#allocation3], 1
    %8 = vsyncpa %s7, 0
    %9 = vsyncpa [#allocation4], 0
    %s10 = scalar_lea.sflag [#allocation4], 1
    %11 = vsyncpa %s10, 0
    loop: start=0, step=1, limit=4
    $region2: #{tpu_custom_call.1} parent=1 // loop_pre_header
      _
    $region3: #{tpu_custom_call.1} parent=1 // loop_header
      %s13 = sphi 0, %s17
      %p14 = scmp.ge.s32.totalorder %s13, 4
      %s23 = sphi 0, %s25
      %s26 = sphi 0, %s23
      %s27 = sphi 0, %s26
      %s43 = sphi 0, %s27
      %s49 = sphi 0, %s51
      %s52 = sphi 0, %s49
      %s53 = sphi 0, %s52
      %s69 = sphi 0, %s53
    $region4: #{tpu_custom_call.1} parent=1 // loop_header_branch
      %16 = sbr.rel (%p14) target = $region8
    $region5: #{tpu_custom_call.1} parent=1 // loop_body
      %s18 = ssub.s32 %s13, 1
      %s19 = ssub.s32 %s13, 2
      %s20 = sadd.s32 %s13, 1
      %s21 = ssub.s32 %s13, %s20
      %p22 = scmp.eq.s32.totalorder %s21, 0
      %s24 = sadd.s32 %s23, 1
      %s25 = scalar_select %p22, %s23, %s24
      %p28 = pneg %p22
      %p29 = scmp.eq.s32.totalorder %s13, 1
      %p30 = por %p28, %p29
      %p31 = scmp.ne.s32.totalorder %s23, %s26
      %p32 = scmp.eq.s32.totalorder %s13, 0
      %p33 = por %p31, %p32
      %p34 = scmp.ne.s32.totalorder %s23, %s26
      %p35 = scmp.eq.s32.totalorder %s18, 1
      %p36 = por %p34, %p35
      %p37 = scmp.ne.s32.totalorder %s26, %s27
      %p38 = scmp.eq.s32.totalorder %s18, 0
      %p39 = por %p37, %p38
      %p40 = scmp.ne.s32.totalorder %s26, %s27
      %p41 = scmp.eq.s32.totalorder %s19, 1
      %p42 = por %p40, %p41
      %p44 = scmp.ne.s32.totalorder %s27, %s43
      %p45 = scmp.eq.s32.totalorder %s19, 0
      %p46 = por %p44, %p45
      %s47 = ssub.s32 %s13, %s20
      %p48 = scmp.eq.s32.totalorder %s47, 0
      %s50 = sadd.s32 %s49, 1
      %s51 = scalar_select %p48, %s49, %s50
      %p54 = pneg %p48
      %p55 = scmp.eq.s32.totalorder %s13, 1
      %p56 = por %p54, %p55
      %p57 = scmp.ne.s32.totalorder %s49, %s52
      %p58 = scmp.eq.s32.totalorder %s13, 0
      %p59 = por %p57, %p58
      %p60 = scmp.ne.s32.totalorder %s49, %s52
      %p61 = scmp.eq.s32.totalorder %s18, 1
      %p62 = por %p60, %p61
      %p63 = scmp.ne.s32.totalorder %s52, %s53
      %p64 = scmp.eq.s32.totalorder %s18, 0
      %p65 = por %p63, %p64
      %p66 = scmp.ne.s32.totalorder %s52, %s53
      %p67 = scmp.eq.s32.totalorder %s19, 1
      %p68 = por %p66, %p67
      %p70 = scmp.ne.s32.totalorder %s53, %s69
      %p71 = scmp.eq.s32.totalorder %s19, 0
      %p72 = por %p70, %p71
      %p73 = scmp.le.s32.totalorder 1, %s13
      %p74 = scmp.lt.s32.totalorder %s13, 3
      %p75 = pnand %p73, %p74
      %p76 = pneg %p75
      // Predicated region
      $region9: #{tpu_custom_call.1} parent=5 // pred_check
        _
      $region10: #{tpu_custom_call.1} parent=5 // pred_check_branch
        %78 = sbr.rel (%p75) target = $region12
      $region11: #{tpu_custom_call.1} parent=5 // pred_region
        %s79 = ssub.s32 %s13, 1
      $region12: #{tpu_custom_call.1} parent=5 // pred_fallthru
        _
      %p80 = scmp.lt.s32.totalorder %s13, 2
      // Predicated region
      $region13: #{tpu_custom_call.1} parent=5 // pred_check
        %p81 = pneg %p80
      $region14: #{tpu_custom_call.1} parent=5 // pred_check_branch
        %83 = sbr.rel (%p81) target = $region16
      $region15: #{tpu_custom_call.1} parent=5 // pred_region
        // Predicated region
        $region17: #{tpu_custom_call.1} parent=15 // pred_check
          %p84 = pneg %p33
        $region18: #{tpu_custom_call.1} parent=15 // pred_check_branch
          %86 = sbr.rel (%p84) target = $region20
        $region19: #{tpu_custom_call.1} parent=15 // pred_region
          %s87 = sand.u32 %s23, 1
          %s88 = scalar_lea.sflag [#allocation3], %s87
          %s89 = sand.u32 %s23, 1
          %s90 = smul.addr %s89, 16
          %s91 = scalar_lea.vmem [#allocation2], %s90
          %s92 = smul.u32 2, %s13
          %s93 = ssub.s32 3, %s92
          %p94 = scmp.lt.s32.totalorder %s93, 2
          %s95 = scalar_select %p94, %s93, 2
          %s96 = smul.u32 128, %s95
          %s98 = ssub.s32 256, %s96
          %99 = vsyncadd %s88, %s98
          %p100 = scmp.ne.s32.totalorder 0, %s96
          %s101 = smul.addr %s92, 128
          %s102 = scalar_lea.hbm %s0, %s101
          %s103 = smul.u32 8, %s95
          %s104 = sshll.u32 %s91, 4
          %s105 = int_to_ptr.vmem [resolvable:$true] %s104
          %s106 = sshll.u32 %s103, 4
          %110 = dma.hbm_to_vmem [thread:$0]  (%p100), %s102, %s106, %s105, %s88, 128, 128, 8
        $region20: #{tpu_custom_call.1} parent=15 // pred_fallthru
          _
      $region16: #{tpu_custom_call.1} parent=5 // pred_fallthru
        _
      %p111 = scmp.le.s32.totalorder 1, %s13
      %p112 = scmp.lt.s32.totalorder %s13, 3
      %p113 = pnand %p111, %p112
      %p114 = pneg %p113
      // Predicated region
      $region21: #{tpu_custom_call.1} parent=5 // pred_check
        _
      $region22: #{tpu_custom_call.1} parent=5 // pred_check_branch
        %116 = sbr.rel (%p113) target = $region24
      $region23: #{tpu_custom_call.1} parent=5 // pred_region
        %s117 = ssub.s32 %s13, 1
        %s118 = sand.u32 %s26, 1
        %s119 = scalar_lea.sflag [#allocation3], %s118
        %s120 = sand.u32 %s26, 1
        %s121 = smul.addr %s120, 16
        %s122 = scalar_lea.vmem [#allocation2], %s121
        // Predicated region
        $region25: #{tpu_custom_call.1} parent=23 // pred_check
          %p123 = pneg %p39
        $region26: #{tpu_custom_call.1} parent=23 // pred_check_branch
          %125 = sbr.rel (%p123) target = $region28
        $region27: #{tpu_custom_call.1} parent=23 // pred_region
          %126 = dma.done %s119, 256
        $region28: #{tpu_custom_call.1} parent=23 // pred_fallthru
          _
        %s127 = sand.u32 %s26, 1
        %s128 = scalar_lea.sflag [#allocation3], %s127
        %s129 = sand.u32 %s26, 1
        %s130 = smul.addr %s129, 16
        %s131 = scalar_lea.vmem [#allocation2], %s130
        %p132 = pneg %p39
        %p133 = pneg %p36
        %p134 = pneg %p65
        %p135 = pneg %p62
        %s136 = sand.u32 %s52, 1
        %s137 = scalar_lea.sflag [#allocation4], %s136
        %s138 = sand.u32 %s52, 1
        %s139 = smul.addr %s138, 16
        %s140 = scalar_lea.vmem [#allocation5], %s139
        %s141 = smul.u32 2, %s18
        %s142 = ssub.s32 3, %s141
        %p143 = scmp.lt.s32.totalorder %s142, 2
        %s144 = scalar_select %p143, %s142, 2
        %s145 = smul.u32 128, %s144
        %s146 = smul.u32 2, %s18
        %s147 = ssub.s32 3, %s146
        %p148 = scmp.lt.s32.totalorder %s147, 2
        %s149 = scalar_select %p148, %s147, 2
        %s150 = smul.u32 128, %s149
        %v151 = vld [vmem:[%s122] sm:$0xff]
        %v152 = vld [vmem:[%s122 + $0x8] sm:$0xff]
        %v153 = vmul.f32 %v151, %v151
        %v154 = vmul.f32 %v152, %v152
        %155 = vadd.xlane.f32.xlu0 %v153
        %v156 = vpop.xlane.xlu0 %155
        %157 = vadd.xlane.f32.xlu0 %v154
        %v158 = vpop.xlane.xlu0 %157
        %v159 = vadd.f32 %v156, 1e-10
        %v160 = vadd.f32 %v158, 1e-10
        %v161 = vrsqrt.pop %v159
        %v162 = vrsqrt.pop %v160
        %v163 = vmul.f32 %v151, %v161
        %v164 = vmul.f32 %v152, %v162
        %165 = vst [vmem:[%s140] sm:$0xff] %v163
        %166 = vst [vmem:[%s140 + $0x8] sm:$0xff] %v164
        %s167 = sand.u32 %s52, 1
        %s168 = scalar_lea.sflag [#allocation4], %s167
        %s169 = sand.u32 %s52, 1
        %s170 = smul.addr %s169, 16
        %s171 = scalar_lea.vmem [#allocation5], %s170
        // Predicated region
        $region29: #{tpu_custom_call.1} parent=23 // pred_check
          %p172 = pneg %p62
        $region30: #{tpu_custom_call.1} parent=23 // pred_check_branch
          %174 = sbr.rel (%p172) target = $region32
        $region31: #{tpu_custom_call.1} parent=23 // pred_region
          %s175 = smul.u32 2, %s18
          %s176 = ssub.s32 3, %s175
          %p177 = scmp.lt.s32.totalorder %s176, 2
          %s178 = scalar_select %p177, %s176, 2
          %s179 = smul.u32 128, %s178
          %s181 = ssub.s32 256, %s179
          %182 = vsyncadd %s168, %s181
          %p183 = scmp.ne.s32.totalorder 0, %s179
          %s184 = smul.addr %s175, 128
          %s185 = scalar_lea.hbm %s1, %s184
          %s186 = smul.u32 8, %s178
          %s187 = sshll.u32 %s171, 4
          %s188 = int_to_ptr.vmem [resolvable:$true] %s187
          %s189 = sshll.u32 %s186, 4
          %193 = dma.vmem_to_hbm [thread:$0]  (%p183), %s188, %s189, %s185, %s168, 128, 128, 8
        $region32: #{tpu_custom_call.1} parent=23 // pred_fallthru
          _
      $region24: #{tpu_custom_call.1} parent=5 // pred_fallthru
        _
      %p194 = scmp.le.s32.totalorder 2, %s13
      // Predicated region
      $region33: #{tpu_custom_call.1} parent=5 // pred_check
        %p195 = pneg %p194
      $region34: #{tpu_custom_call.1} parent=5 // pred_check_branch
        %197 = sbr.rel (%p195) target = $region36
      $region35: #{tpu_custom_call.1} parent=5 // pred_region
        %s198 = ssub.s32 %s13, 2
        // Predicated region
        $region37: #{tpu_custom_call.1} parent=35 // pred_check
          %p199 = pneg %p68
        $region38: #{tpu_custom_call.1} parent=35 // pred_check_branch
          %201 = sbr.rel (%p199) target = $region40
        $region39: #{tpu_custom_call.1} parent=35 // pred_region
          %s202 = sand.u32 %s53, 1
          %s203 = scalar_lea.sflag [#allocation4], %s202
          %s204 = sand.u32 %s53, 1
          %s205 = smul.addr %s204, 16
          %s206 = scalar_lea.vmem [#allocation5], %s205
          %207 = dma.done %s203, 256
        $region40: #{tpu_custom_call.1} parent=35 // pred_fallthru
          _
      $region36: #{tpu_custom_call.1} parent=5 // pred_fallthru
        _
    $region6: #{tpu_custom_call.1} parent=1 // loop_footer
      %s17 = sadd.s32 1, %s13
    $region7: #{tpu_custom_call.1} parent=1 // loop_footer_branch
      %12 = sbr.rel target = $region3
    $region8: #{tpu_custom_call.1} parent=1 // loop_exit
      _
    %208 = vsyncpa [#allocation3], 1
    %s209 = scalar_lea.sflag [#allocation3], 1
    %210 = vsyncpa %s209, 1
    %211 = vsyncpa [#allocation4], 1
    %s212 = scalar_lea.sflag [#allocation4], 1
    %213 = vsyncpa %s212, 1

</llo_original>
